<compile_context>
chip_gen: v6e
topology: v6e:2x2x1
jax: 0.10.0
libtpu: 0.0.40
codegen_flags: <defaults>
</compile_context>

<pallas_src>
import jax
import jax.numpy as jnp
from jax.experimental import pallas as pl
from jax.experimental.pallas import tpu as pltpu

_LANES = 128
_SUBLANES = 8
_MAX_BLOCK_ROWS = 4096            # (4096, 128) f32 = 2 MiB per input buffer
_MIN_PALLAS_ROWS = 1024           # >= 512 KiB / tensor before a launch pays off
_VMEM_LIMIT_BYTES = 32 * 1024 * 1024


def _round_up(x, m):
    return ((x + m - 1) // m) * m


def _num_tensorcores():
    """Parallel grid-axis width: 2 only on multi-TensorCore chips (v7x)."""
    try:
        kind = jax.devices()[0].device_kind.lower()
    except Exception:
        return 1
    return 2 if "v7" in kind else 1


def _make_sum_sq_kernel(block_rows, blocks_per_core, num_blocks, total_rows):
    """Kernel: accumulate sum((p - t)^2) over the row-blocks of one core."""
    tiles = block_rows // _SUBLANES
    mask_tail = (total_rows % block_rows) != 0     # only the last block is partial
    last_blk = num_blocks - 1

    def kernel(p_ref, t_ref, o_ref, acc_ref):
        j = pl.program_id(1)                       # block index within this core

        @pl.when(j == 0)
        def _():
            acc_ref[...] = jnp.zeros_like(acc_ref)

        d = p_ref[...].astype(jnp.float32) - t_ref[...].astype(jnp.float32)
        sq = d * d

        def fold(vals):
            # Sublane-aligned fold: (tiles, 8, 128) -> (8, 128); pure VPU adds,
            # exactly one add per input vreg, single-vreg accumulator RMW.
            acc_ref[...] += vals.reshape(tiles, _SUBLANES, _LANES).sum(axis=0)

        if mask_tail:
            blk = pl.program_id(0) * blocks_per_core + j

            @pl.when(blk == last_blk)
            def _():
                row_ids = (last_blk * block_rows
                           + jax.lax.broadcasted_iota(
                               jnp.int32, (block_rows, _LANES), 0))
                fold(jnp.where(row_ids < total_rows, sq, jnp.float32(0.0)))

            @pl.when(blk != last_blk)
            def _():
                fold(sq)
        else:
            fold(sq)

        @pl.when(j == pl.num_programs(1) - 1)
        def _():
            o_ref[0, 0] = jnp.sum(acc_ref[...])     # single cross-lane reduce

    return kernel


def _pallas_sum_sq_diff(p2, t2):
    """Sum of squared differences of two (rows, 128) arrays (rows >= 1024)."""
    rows = p2.shape[0]
    block_rows = min(_MAX_BLOCK_ROWS, _round_up(rows, _SUBLANES))
    num_blocks = (rows + block_rows - 1) // block_rows

    hw_cores = _num_tensorcores()
    # Split across TensorCores only when it divides evenly: no clamped /
    # duplicated block DMA, and tail masking stays confined to the last block.
    cores = hw_cores if (hw_cores > 1 and num_blocks % hw_cores == 0) else 1
    blocks_per_core = num_blocks // cores

    def in_map(c, j):
        return (c * blocks_per_core + j, 0)

    n_elems = rows * _LANES
    cost = pl.CostEstimate(
        flops=3 * n_elems,
        transcendentals=0,
        bytes_accessed=2 * n_elems * p2.dtype.itemsize)

    partial = pl.pallas_call(
        _make_sum_sq_kernel(block_rows, blocks_per_core, num_blocks, rows),
        out_shape=jax.ShapeDtypeStruct((cores, 1), jnp.float32),
        grid=(cores, blocks_per_core),
        in_specs=[
            pl.BlockSpec((block_rows, _LANES), in_map),
            pl.BlockSpec((block_rows, _LANES), in_map),
        ],
        out_specs=pl.BlockSpec((1, 1), lambda c, j: (c, 0),
                               memory_space=pltpu.SMEM),
        scratch_shapes=[pltpu.VMEM((_SUBLANES, _LANES), jnp.float32)],
        compiler_params=pltpu.CompilerParams(
            dimension_semantics=("parallel", "arbitrary"),
            vmem_limit_bytes=_VMEM_LIMIT_BYTES),
        cost_estimate=cost,
    )(p2, t2)
    return jnp.sum(partial)


def _mse(pred, true):
    """Batch MSE = mean((pred - true)^2); 0.0 for empty tensors."""
    n = int(pred.size)
    if n == 0:
        return jnp.float32(0.0)
    flat_p = jnp.ravel(pred)
    flat_t = jnp.ravel(true)

    if n % _LANES == 0:
        rows = n // _LANES
        if rows >= _MIN_PALLAS_ROWS:
            # Full-array reshape: zero-copy (rows, 128) view, no slice copies.
            total = _pallas_sum_sq_diff(flat_p.reshape(rows, _LANES),
                                        flat_t.reshape(rows, _LANES))
            return total / jnp.float32(n)

    # Small or lane-unaligned tensors: XLA's fused reduction is already at the
    # HBM roofline with zero launch cost and no slice/pad copies.
    d = flat_p.astype(jnp.float32) - flat_t.astype(jnp.float32)
    return jnp.sum(d * d) / jnp.float32(n)


class ValLoss:
    """JAX/Pallas re-implementation of the forward pass of ValLoss."""

    def __init__(self):
        # TODO(synk): stateful torchmetrics epoch accumulation
        # (compute/reset/log_epoch_metrics) and wandb logging not translated.
        pass

    def __call__(self, masked_pred_epsX, masked_pred_epsE, pred_y,
                 true_epsX, true_epsE, true_y, log: bool = False):
        mse_X = _mse(masked_pred_epsX, true_epsX)
        mse_E = _mse(masked_pred_epsE, true_epsE)
        mse_y = _mse(pred_y, true_y)
        return mse_X + mse_E + mse_y


if __name__ == "__main__":
    key = jax.random.PRNGKey(0)
    # Shapes chosen so every code path is exercised while staying small:
    #   X : (3, 128, 512)     -> 196,608 elems = 1536 rows  -> Pallas, one full
    #                            block, no masking.
    #   E : (3, 128, 128, 16) -> 786,432 elems = 6144 rows  -> Pallas, 2 blocks
    #                            of 4096 rows, last block partial (tail mask).
    #   y : (3, 5)            -> tiny, lane-unaligned       -> fused jnp path.
    bs, n, dx, de, dy = 3, 128, 512, 16, 5

    k1, k2, k3, k4, k5, k6 = jax.random.split(key, 6)
    pred_X = jax.random.normal(k1, (bs, n, dx), dtype=jnp.float32)
    true_X = jax.random.normal(k2, (bs, n, dx), dtype=jnp.float32)
    pred_E = jax.random.normal(k3, (bs, n, n, de), dtype=jnp.float32)
    true_E = jax.random.normal(k4, (bs, n, n, de), dtype=jnp.float32)
    pred_y = jax.random.normal(k5, (bs, dy), dtype=jnp.float32)
    true_y = jax.random.normal(k6, (bs, dy), dtype=jnp.float32)

    val_loss = ValLoss()
    out = val_loss(pred_X, pred_E, pred_y, true_X, true_E, true_y, log=False)
    out = jax.block_until_ready(out)

    # reference check in plain JAX
    ref = (jnp.mean((pred_X - true_X) ** 2)
           + jnp.mean((pred_E - true_E) ** 2)
           + jnp.mean((pred_y - true_y) ** 2))
    assert jnp.allclose(out, ref, rtol=1e-5, atol=1e-5), (out, ref)

    print("KERNEL_OK")
</pallas_src>

<mosaic_0001>
module attributes {stable_mosaic.version = 11 : i64} {
  func.func @kernel(%arg0: i32, %arg1: i32, %arg2: memref<1536x128xf32, #tpu.memory_space<vmem>>, %arg3: memref<1536x128xf32, #tpu.memory_space<vmem>>, %arg4: memref<1x1xf32, #tpu.memory_space<smem>>, %arg5: memref<8x128xf32, #tpu.memory_space<vmem>>) attributes {dimension_semantics = [#tpu.dimension_semantics<parallel>, #tpu.dimension_semantics<arbitrary>], iteration_bounds = array<i64: 1, 1>, scalar_prefetch = 0 : i64, scratch_operands = 1 : i64, tpu.core_type = #tpu.core_type<tc>, window_params = [{transform_indices = @transform_0, window_bounds = array<i64: 1536, 128>}, {transform_indices = @transform_1, window_bounds = array<i64: 1536, 128>}, {transform_indices = @transform_2, window_bounds = array<i64: 1, 1>}]} {
    %c0_i32 = arith.constant 0 : i32
    %0 = arith.cmpi eq, %arg1, %c0_i32 : i32
    %1 = arith.extui %0 : i1 to i32
    %c0_i32_0 = arith.constant 0 : i32
    %2 = arith.cmpi ne, %1, %c0_i32_0 : i32
    scf.if %2 {
      %cst_10 = arith.constant 0.000000e+00 : f32
      %15 = vector.broadcast %cst_10 : f32 to vector<8x128xf32>
      %c0_11 = arith.constant 0 : index
      %c0_12 = arith.constant 0 : index
      %16 = vector.load %arg5[%c0_11, %c0_12] : memref<8x128xf32, #tpu.memory_space<vmem>>, vector<8x128xf32>
      tpu.vector_store %arg5[%c0_11, %c0_12], %15 {strides = array<i32>} : memref<8x128xf32, #tpu.memory_space<vmem>>, vector<8x128xf32>,
    } else {
    }
    %c0 = arith.constant 0 : index
    %c0_1 = arith.constant 0 : index
    %3 = vector.load %arg2[%c0, %c0_1] : memref<1536x128xf32, #tpu.memory_space<vmem>>, vector<1536x128xf32>
    %c0_2 = arith.constant 0 : index
    %c0_3 = arith.constant 0 : index
    %4 = vector.load %arg3[%c0_2, %c0_3] : memref<1536x128xf32, #tpu.memory_space<vmem>>, vector<1536x128xf32>
    %5 = arith.subf %3, %4 : vector<1536x128xf32>
    %6 = arith.mulf %5, %5 : vector<1536x128xf32>
    %c0_4 = arith.constant 0 : index
    %c0_5 = arith.constant 0 : index
    %7 = vector.load %arg5[%c0_4, %c0_5] : memref<8x128xf32, #tpu.memory_space<vmem>>, vector<8x128xf32>
    %8 = vector.shape_cast %6 : vector<1536x128xf32> to vector<192x8x128xf32>
    %cst = arith.constant dense<0.000000e+00> : vector<8x128xf32>
    %9 = vector.multi_reduction <add>, %8, %cst [0] : vector<192x8x128xf32> to vector<8x128xf32>
    %10 = arith.addf %7, %9 : vector<8x128xf32>
    %c0_6 = arith.constant 0 : index
    %c0_7 = arith.constant 0 : index
    %11 = vector.load %arg5[%c0_6, %c0_7] : memref<8x128xf32, #tpu.memory_space<vmem>>, vector<8x128xf32>
    tpu.vector_store %arg5[%c0_6, %c0_7], %10 {strides = array<i32>} : memref<8x128xf32, #tpu.memory_space<vmem>>, vector<8x128xf32>,
    %c0_i32_8 = arith.constant 0 : i32
    %12 = arith.cmpi eq, %arg1, %c0_i32_8 : i32
    %13 = arith.extui %12 : i1 to i32
    %c0_i32_9 = arith.constant 0 : i32
    %14 = arith.cmpi ne, %13, %c0_i32_9 : i32
    scf.if %14 {
      %c0_10 = arith.constant 0 : index
      %c0_11 = arith.constant 0 : index
      %15 = vector.load %arg5[%c0_10, %c0_11] : memref<8x128xf32, #tpu.memory_space<vmem>>, vector<8x128xf32>
      %16 = vector.shape_cast %15 : vector<8x128xf32> to vector<1x8x128xf32>
      %cst_12 = arith.constant dense<0.000000e+00> : vector<1xf32>
      %17 = vector.multi_reduction <add>, %16, %cst_12 [1, 2] : vector<1x8x128xf32> to vector<1xf32>
      %18 = vector.shape_cast %17 : vector<1xf32> to vector<1x1x1xf32>
      %19 = vector.extract %18[0, 0, 0] : f32 from vector<1x1x1xf32>
      %c0_13 = arith.constant 0 : index
      %c0_14 = arith.constant 0 : index
      %20 = memref.load %arg4[%c0_13, %c0_14] : memref<1x1xf32, #tpu.memory_space<smem>>
      memref.store %19, %arg4[%c0_13, %c0_14] : memref<1x1xf32, #tpu.memory_space<smem>>
    } else {
    }
    return
  }
  func.func @transform_0(%arg0: i32, %arg1: i32) -> (i32, i32) {
    %c1_i32 = arith.constant 1 : i32
    %0 = arith.muli %arg0, %c1_i32 : i32
    %1 = arith.addi %0, %arg1 : i32
    %c0_i32 = arith.constant 0 : i32
    %c0_i32_0 = arith.constant 0 : i32
    return %1, %c0_i32 : i32, i32
  }
  func.func @transform_1(%arg0: i32, %arg1: i32) -> (i32, i32) {
    %c1_i32 = arith.constant 1 : i32
    %0 = arith.muli %arg0, %c1_i32 : i32
    %1 = arith.addi %0, %arg1 : i32
    %c0_i32 = arith.constant 0 : i32
    %c0_i32_0 = arith.constant 0 : i32
    return %1, %c0_i32 : i32, i32
  }
  func.func @transform_2(%arg0: i32, %arg1: i32) -> (i32, i32) {
    %c0_i32 = arith.constant 0 : i32
    %c0_i32_0 = arith.constant 0 : i32
    return %arg0, %c0_i32 : i32, i32
  }
}

</mosaic_0001>

<llo_original>
// kernel: tpu_custom_call.1
$region0: #{tpu_custom_call.1}
  #allocation0 [shape = 'u32[]', space=smem, size = 0x4, offset = 0x4, fixed_abs, tag = 'smem constant byte address 0x4 - core index']
  #allocation1 [shape = 'u32[144,128]{1,0:T(1,128)}', space=vmem, size = 0x12000, scoped, tag = 'internal scratch']
  #allocation2 [shape = 'f32[8,128]{1,0:T(8,128)}', space=vmem, size = 0x1000, scoped, tag = 'scratch operand']
  %s0 = inlined_call_operand.hbm [shape: f32[1536,128], index: 0, kind: input, shape index: {}]
  %s1 = inlined_call_operand.hbm [shape: f32[1536,128], index: 1, kind: input, shape index: {}]
  %s2 = inlined_call_operand.hbm [shape: f32[1,1], index: 2, kind: output, shape index: {}]
  %s3 = sld [smem:[#allocation0]]
  $region34: #{tpu_custom_call.1} parent=0
    _
  %s5 = ssub.s32 1, %s3
  %s6 = scalar_select 0, %s5, %s3
  $region1: #{tpu_custom_call.1} parent=0
    #allocation3 [shape = 'u8[786432]{0}', space=vmem, size = 0xc0000, scoped, tag = 'input window, operand 0, single buffered']
    #allocation4 [shape = 's32[1]{0}', space=sflag, size = 0x4, scoped, tag = 'scoped memory for tpu_custom_call.1']
    #allocation5 [shape = 's32[1]{0}', space=sflag, size = 0x4, scoped, tag = 'scoped memory for tpu_custom_call.1']
    #allocation6 [shape = 'u8[786432]{0}', space=vmem, size = 0xc0000, scoped, tag = 'input window, operand 1, single buffered']
    #allocation7 [shape = 's32[1]{0}', space=sflag, size = 0x4, scoped, tag = 'scoped memory for tpu_custom_call.1']
    #allocation8 [shape = 'u8[512]{0}', space=smem, size = 0x200, scoped, tag = 'output window, operand 0, single buffered']
    %7 = vsyncpa [#allocation4], 0
    %8 = vsyncpa [#allocation7], 0
    %9 = vsyncpa [#allocation5], 0
    // Predicated region
    $region2: #{tpu_custom_call.1} parent=1 // pred_check
      _
    $region3: #{tpu_custom_call.1} parent=1 // pred_check_branch
      %11 = sbr.rel (0) target = $region5
    $region4: #{tpu_custom_call.1} parent=1 // pred_region
      %s12 = sadd.s32 0, 0
      %s13 = smul.u32 192, %s12
      %s15 = ssub.s32 24576, 24576
      %16 = vsyncadd [#allocation4], %s15
      %s17 = smul.addr %s13, 128
      %s18 = scalar_lea.hbm %s0, %s17
      %s19 = sshll.u32 [#allocation3], 4
      %s20 = int_to_ptr.vmem [resolvable:$true] %s19
      %25 = dma.hbm_to_vmem [thread:$0]  %s18, 24576, %s20, [#allocation4], 128, 128, 8
    $region5: #{tpu_custom_call.1} parent=1 // pred_fallthru
      _
    // Predicated region
    $region6: #{tpu_custom_call.1} parent=1 // pred_check
      _
    $region7: #{tpu_custom_call.1} parent=1 // pred_check_branch
      %27 = sbr.rel (0) target = $region9
    $region8: #{tpu_custom_call.1} parent=1 // pred_region
      %s28 = sadd.s32 0, 0
      %s29 = smul.u32 192, %s28
      %s31 = ssub.s32 24576, 24576
      %32 = vsyncadd [#allocation7], %s31
      %s33 = smul.addr %s29, 128
      %s34 = scalar_lea.hbm %s1, %s33
      %s35 = sshll.u32 [#allocation6], 4
      %s36 = int_to_ptr.vmem [resolvable:$true] %s35
      %41 = dma.hbm_to_vmem [thread:$0]  %s34, 24576, %s36, [#allocation7], 128, 128, 8
    $region9: #{tpu_custom_call.1} parent=1 // pred_fallthru
      _
    // Predicated region
    $region10: #{tpu_custom_call.1} parent=1 // pred_check
      _
    $region11: #{tpu_custom_call.1} parent=1 // pred_check_branch
      %43 = sbr.rel (0) target = $region13
    $region12: #{tpu_custom_call.1} parent=1 // pred_region
      %44 = dma.done [#allocation4], 24576
    $region13: #{tpu_custom_call.1} parent=1 // pred_fallthru
      _
    // Predicated region
    $region14: #{tpu_custom_call.1} parent=1 // pred_check
      _
    $region15: #{tpu_custom_call.1} parent=1 // pred_check_branch
      %46 = sbr.rel (0) target = $region17
    $region16: #{tpu_custom_call.1} parent=1 // pred_region
      %47 = dma.done [#allocation7], 24576
    $region17: #{tpu_custom_call.1} parent=1 // pred_fallthru
      _
    %s48 = sadd.s32 0, 0
    %s49 = smul.u32 192, %s48
    %s50 = sadd.s32 0, 0
    %s51 = smul.u32 192, %s50
    %p52 = scmp.eq.s32.totalorder 0, 0
    // Predicated region
    $region18: #{tpu_custom_call.1} parent=1 // pred_check
      %p53 = pneg %p52
    $region19: #{tpu_custom_call.1} parent=1 // pred_check_branch
      %55 = sbr.rel (%p53) target = $region21
    $region20: #{tpu_custom_call.1} parent=1 // pred_region
      %56 = vst [vmem:[#allocation2] sm:$0xff] 0.0
    $region21: #{tpu_custom_call.1} parent=1 // pred_fallthru
      _
    %v57 = vld [vmem:[#allocation3] sm:$0xff]
    %v58 = vld [vmem:[#allocation3 + $0x8] sm:$0xff]
    %v59 = vld [vmem:[#allocation3 + $0x10] sm:$0xff]
    %v60 = vld [vmem:[#allocation3 + $0x18] sm:$0xff]
    %v61 = vld [vmem:[#allocation3 + $0x20] sm:$0xff]
    %v62 = vld [vmem:[#allocation3 + $0x28] sm:$0xff]
    %v63 = vld [vmem:[#allocation3 + $0x30] sm:$0xff]
    %v64 = vld [vmem:[#allocation3 + $0x38] sm:$0xff]
    %v65 = vld [vmem:[#allocation3 + $0x40] sm:$0xff]
    %v66 = vld [vmem:[#allocation3 + $0x48] sm:$0xff]
    %v67 = vld [vmem:[#allocation3 + $0x50] sm:$0xff]
    %v68 = vld [vmem:[#allocation3 + $0x58] sm:$0xff]
    %v69 = vld [vmem:[#allocation3 + $0x60] sm:$0xff]
    %v70 = vld [vmem:[#allocation3 + $0x68] sm:$0xff]
    %v71 = vld [vmem:[#allocation3 + $0x70] sm:$0xff]
    %v72 = vld [vmem:[#allocation3 + $0x78] sm:$0xff]
    %v73 = vld [vmem:[#allocation3 + $0x80] sm:$0xff]
    %v74 = vld [vmem:[#allocation3 + $0x88] sm:$0xff]
    %v75 = vld [vmem:[#allocation3 + $0x90] sm:$0xff]
    %v76 = vld [vmem:[#allocation3 + $0x98] sm:$0xff]
    %v77 = vld [vmem:[#allocation3 + $0xa0] sm:$0xff]
    %v78 = vld [vmem:[#allocation3 + $0xa8] sm:$0xff]
    %v79 = vld [vmem:[#allocation3 + $0xb0] sm:$0xff]
    %v80 = vld [vmem:[#allocation3 + $0xb8] sm:$0xff]
    %v81 = vld [vmem:[#allocation3 + $0xc0] sm:$0xff]
    %v82 = vld [vmem:[#allocation3 + $0xc8] sm:$0xff]
    %v83 = vld [vmem:[#allocation3 + $0xd0] sm:$0xff]
    %v84 = vld [vmem:[#allocation3 + $0xd8] sm:$0xff]
    %v85 = vld [vmem:[#allocation3 + $0xe0] sm:$0xff]
    %v86 = vld [vmem:[#allocation3 + $0xe8] sm:$0xff]
    %v87 = vld [vmem:[#allocation3 + $0xf0] sm:$0xff]
    %v88 = vld [vmem:[#allocation3 + $0xf8] sm:$0xff]
    %v89 = vld [vmem:[#allocation3 + $0x100] sm:$0xff]
    %v90 = vld [vmem:[#allocation3 + $0x108] sm:$0xff]
    %v91 = vld [vmem:[#allocation3 + $0x110] sm:$0xff]
    %v92 = vld [vmem:[#allocation3 + $0x118] sm:$0xff]
    %v93 = vld [vmem:[#allocation3 + $0x120] sm:$0xff]
    %v94 = vld [vmem:[#allocation3 + $0x128] sm:$0xff]
    %v95 = vld [vmem:[#allocation3 + $0x130] sm:$0xff]
    %v96 = vld [vmem:[#allocation3 + $0x138] sm:$0xff]
    %v97 = vld [vmem:[#allocation3 + $0x140] sm:$0xff]
    %v98 = vld [vmem:[#allocation3 + $0x148] sm:$0xff]
    %v99 = vld [vmem:[#allocation3 + $0x150] sm:$0xff]
    %v100 = vld [vmem:[#allocation3 + $0x158] sm:$0xff]
    %v101 = vld [vmem:[#allocation3 + $0x160] sm:$0xff]
    %v102 = vld [vmem:[#allocation3 + $0x168] sm:$0xff]
    %v103 = vld [vmem:[#allocation3 + $0x170] sm:$0xff]
    %v104 = vld [vmem:[#allocation3 + $0x178] sm:$0xff]
    %v105 = vld [vmem:[#allocation3 + $0x180] sm:$0xff]
    %v106 = vld [vmem:[#allocation3 + $0x188] sm:$0xff]
    %v107 = vld [vmem:[#allocation3 + $0x190] sm:$0xff]
    %v108 = vld [vmem:[#allocation3 + $0x198] sm:$0xff]
    %v109 = vld [vmem:[#allocation3 + $0x1a0] sm:$0xff]
    %v110 = vld [vmem:[#allocation3 + $0x1a8] sm:$0xff]
    %v111 = vld [vmem:[#allocation3 + $0x1b0] sm:$0xff]
    %v112 = vld [vmem:[#allocation3 + $0x1b8] sm:$0xff]
    %v113 = vld [vmem:[#allocation3 + $0x1c0] sm:$0xff]
    %v114 = vld [vmem:[#allocation3 + $0x1c8] sm:$0xff]
    %v115 = vld [vmem:[#allocation3 + $0x1d0] sm:$0xff]
    %v116 = vld [vmem:[#allocation3 + $0x1d8] sm:$0xff]
    %v117 = vld [vmem:[#allocation3 + $0x1e0] sm:$0xff]
    %v118 = vld [vmem:[#allocation3 + $0x1e8] sm:$0xff]
    %v119 = vld [vmem:[#allocation3 + $0x1f0] sm:$0xff]
    %v120 = vld [vmem:[#allocation3 + $0x1f8] sm:$0xff]
    %v121 = vld [vmem:[#allocation3 + $0x200] sm:$0xff]
    %v122 = vld [vmem:[#allocation3 + $0x208] sm:$0xff]
    %v123 = vld [vmem:[#allocation3 + $0x210] sm:$0xff]
    %v124 = vld [vmem:[#allocation3 + $0x218] sm:$0xff]
    %v125 = vld [vmem:[#allocation3 + $0x220] sm:$0xff]
    %v126 = vld [vmem:[#allocation3 + $0x228] sm:$0xff]
    %v127 = vld [vmem:[#allocation3 + $0x230] sm:$0xff]
    %v128 = vld [vmem:[#allocation3 + $0x238] sm:$0xff]
    %v129 = vld [vmem:[#allocation3 + $0x240] sm:$0xff]
    %v130 = vld [vmem:[#allocation3 + $0x248] sm:$0xff]
    %v131 = vld [vmem:[#allocation3 + $0x250] sm:$0xff]
    %v132 = vld [vmem:[#allocation3 + $0x258] sm:$0xff]
    %v133 = vld [vmem:[#allocation3 + $0x260] sm:$0xff]
    %v134 = vld [vmem:[#allocation3 + $0x268] sm:$0xff]
    %v135 = vld [vmem:[#allocation3 + $0x270] sm:$0xff]
    %v136 = vld [vmem:[#allocation3 + $0x278] sm:$0xff]
    %v137 = vld [vmem:[#allocation3 + $0x280] sm:$0xff]
    %v138 = vld [vmem:[#allocation3 + $0x288] sm:$0xff]
    %v139 = vld [vmem:[#allocation3 + $0x290] sm:$0xff]
    %v140 = vld [vmem:[#allocation3 + $0x298] sm:$0xff]
    %v141 = vld [vmem:[#allocation3 + $0x2a0] sm:$0xff]
    %v142 = vld [vmem:[#allocation3 + $0x2a8] sm:$0xff]
    %v143 = vld [vmem:[#allocation3 + $0x2b0] sm:$0xff]
    %v144 = vld [vmem:[#allocation3 + $0x2b8] sm:$0xff]
    %v145 = vld [vmem:[#allocation3 + $0x2c0] sm:$0xff]
    %v146 = vld [vmem:[#allocation3 + $0x2c8] sm:$0xff]
    %v147 = vld [vmem:[#allocation3 + $0x2d0] sm:$0xff]
    %v148 = vld [vmem:[#allocation3 + $0x2d8] sm:$0xff]
    %v149 = vld [vmem:[#allocation3 + $0x2e0] sm:$0xff]
    %v150 = vld [vmem:[#allocation3 + $0x2e8] sm:$0xff]
    %v151 = vld [vmem:[#allocation3 + $0x2f0] sm:$0xff]
    %v152 = vld [vmem:[#allocation3 + $0x2f8] sm:$0xff]
    %v153 = vld [vmem:[#allocation3 + $0x300] sm:$0xff]
    %v154 = vld [vmem:[#allocation3 + $0x308] sm:$0xff]
    %v155 = vld [vmem:[#allocation3 + $0x310] sm:$0xff]
    %v156 = vld [vmem:[#allocation3 + $0x318] sm:$0xff]
    %v157 = vld [vmem:[#allocation3 + $0x320] sm:$0xff]
    %v158 = vld [vmem:[#allocation3 + $0x328] sm:$0xff]
    %v159 = vld [vmem:[#allocation3 + $0x330] sm:$0xff]
    %v160 = vld [vmem:[#allocation3 + $0x338] sm:$0xff]
    %v161 = vld [vmem:[#allocation3 + $0x340] sm:$0xff]
    %v162 = vld [vmem:[#allocation3 + $0x348] sm:$0xff]
    %v163 = vld [vmem:[#allocation3 + $0x350] sm:$0xff]
    %v164 = vld [vmem:[#allocation3 + $0x358] sm:$0xff]
    %v165 = vld [vmem:[#allocation3 + $0x360] sm:$0xff]
    %v166 = vld [vmem:[#allocation3 + $0x368] sm:$0xff]
    %v167 = vld [vmem:[#allocation3 + $0x370] sm:$0xff]
    %v168 = vld [vmem:[#allocation3 + $0x378] sm:$0xff]
    %v169 = vld [vmem:[#allocation3 + $0x380] sm:$0xff]
    %v170 = vld [vmem:[#allocation3 + $0x388] sm:$0xff]
    %v171 = vld [vmem:[#allocation3 + $0x390] sm:$0xff]
    %v172 = vld [vmem:[#allocation3 + $0x398] sm:$0xff]
    %v173 = vld [vmem:[#allocation3 + $0x3a0] sm:$0xff]
    %v174 = vld [vmem:[#allocation3 + $0x3a8] sm:$0xff]
    %v175 = vld [vmem:[#allocation3 + $0x3b0] sm:$0xff]
    %v176 = vld [vmem:[#allocation3 + $0x3b8] sm:$0xff]
    %v177 = vld [vmem:[#allocation3 + $0x3c0] sm:$0xff]
    %v178 = vld [vmem:[#allocation3 + $0x3c8] sm:$0xff]
    %v179 = vld [vmem:[#allocation3 + $0x3d0] sm:$0xff]
    %v180 = vld [vmem:[#allocation3 + $0x3d8] sm:$0xff]
    %v181 = vld [vmem:[#allocation3 + $0x3e0] sm:$0xff]
    %v182 = vld [vmem:[#allocation3 + $0x3e8] sm:$0xff]
    %v183 = vld [vmem:[#allocation3 + $0x3f0] sm:$0xff]
    %v184 = vld [vmem:[#allocation3 + $0x3f8] sm:$0xff]
    %v185 = vld [vmem:[#allocation3 + $0x400] sm:$0xff]
    %v186 = vld [vmem:[#allocation3 + $0x408] sm:$0xff]
    %v187 = vld [vmem:[#allocation3 + $0x410] sm:$0xff]
    %v188 = vld [vmem:[#allocation3 + $0x418] sm:$0xff]
    %v189 = vld [vmem:[#allocation3 + $0x420] sm:$0xff]
    %v190 = vld [vmem:[#allocation3 + $0x428] sm:$0xff]
    %v191 = vld [vmem:[#allocation3 + $0x430] sm:$0xff]
    %v192 = vld [vmem:[#allocation3 + $0x438] sm:$0xff]
    %v193 = vld [vmem:[#allocation3 + $0x440] sm:$0xff]
    %v194 = vld [vmem:[#allocation3 + $0x448] sm:$0xff]
    %v195 = vld [vmem:[#allocation3 + $0x450] sm:$0xff]
    %v196 = vld [vmem:[#allocation3 + $0x458] sm:$0xff]
    %v197 = vld [vmem:[#allocation3 + $0x460] sm:$0xff]
    %v198 = vld [vmem:[#allocation3 + $0x468] sm:$0xff]
    %v199 = vld [vmem:[#allocation3 + $0x470] sm:$0xff]
    %v200 = vld [vmem:[#allocation3 + $0x478] sm:$0xff]
    %v201 = vld [vmem:[#allocation3 + $0x480] sm:$0xff]
    %v202 = vld [vmem:[#allocation3 + $0x488] sm:$0xff]
    %v203 = vld [vmem:[#allocation3 + $0x490] sm:$0xff]
    %v204 = vld [vmem:[#allocation3 + $0x498] sm:$0xff]
    %v205 = vld [vmem:[#allocation3 + $0x4a0] sm:$0xff]
    %v206 = vld [vmem:[#allocation3 + $0x4a8] sm:$0xff]
    %v207 = vld [vmem:[#allocation3 + $0x4b0] sm:$0xff]
    %v208 = vld [vmem:[#allocation3 + $0x4b8] sm:$0xff]
    %v209 = vld [vmem:[#allocation3 + $0x4c0] sm:$0xff]
    %v210 = vld [vmem:[#allocation3 + $0x4c8] sm:$0xff]
    %v211 = vld [vmem:[#allocation3 + $0x4d0] sm:$0xff]
    %v212 = vld [vmem:[#allocation3 + $0x4d8] sm:$0xff]
    %v213 = vld [vmem:[#allocation3 + $0x4e0] sm:$0xff]
    %v214 = vld [vmem:[#allocation3 + $0x4e8] sm:$0xff]
    %v215 = vld [vmem:[#allocation3 + $0x4f0] sm:$0xff]
    %v216 = vld [vmem:[#allocation3 + $0x4f8] sm:$0xff]
    %v217 = vld [vmem:[#allocation3 + $0x500] sm:$0xff]
    %v218 = vld [vmem:[#allocation3 + $0x508] sm:$0xff]
    %v219 = vld [vmem:[#allocation3 + $0x510] sm:$0xff]
    %v220 = vld [vmem:[#allocation3 + $0x518] sm:$0xff]
    %v221 = vld [vmem:[#allocation3 + $0x520] sm:$0xff]
    %v222 = vld [vmem:[#allocation3 + $0x528] sm:$0xff]
    %v223 = vld [vmem:[#allocation3 + $0x530] sm:$0xff]
    %v224 = vld [vmem:[#allocation3 + $0x538] sm:$0xff]
    %v225 = vld [vmem:[#allocation3 + $0x540] sm:$0xff]
    %v226 = vld [vmem:[#allocation3 + $0x548] sm:$0xff]
    %v227 = vld [vmem:[#allocation3 + $0x550] sm:$0xff]
    %v228 = vld [vmem:[#allocation3 + $0x558] sm:$0xff]
    %v229 = vld [vmem:[#allocation3 + $0x560] sm:$0xff]
    %v230 = vld [vmem:[#allocation3 + $0x568] sm:$0xff]
    %v231 = vld [vmem:[#allocation3 + $0x570] sm:$0xff]
    %v232 = vld [vmem:[#allocation3 + $0x578] sm:$0xff]
    %v233 = vld [vmem:[#allocation3 + $0x580] sm:$0xff]
    %v234 = vld [vmem:[#allocation3 + $0x588] sm:$0xff]
    %v235 = vld [vmem:[#allocation3 + $0x590] sm:$0xff]
    %v236 = vld [vmem:[#allocation3 + $0x598] sm:$0xff]
    %v237 = vld [vmem:[#allocation3 + $0x5a0] sm:$0xff]
    %v238 = vld [vmem:[#allocation3 + $0x5a8] sm:$0xff]
    %v239 = vld [vmem:[#allocation3 + $0x5b0] sm:$0xff]
    %v240 = vld [vmem:[#allocation3 + $0x5b8] sm:$0xff]
    %v241 = vld [vmem:[#allocation3 + $0x5c0] sm:$0xff]
    %v242 = vld [vmem:[#allocation3 + $0x5c8] sm:$0xff]
    %v243 = vld [vmem:[#allocation3 + $0x5d0] sm:$0xff]
    %v244 = vld [vmem:[#allocation3 + $0x5d8] sm:$0xff]
    %v245 = vld [vmem:[#allocation3 + $0x5e0] sm:$0xff]
    %v246 = vld [vmem:[#allocation3 + $0x5e8] sm:$0xff]
    %v247 = vld [vmem:[#allocation3 + $0x5f0] sm:$0xff]
    %v248 = vld [vmem:[#allocation3 + $0x5f8] sm:$0xff]
    %v249 = vld [vmem:[#allocation6] sm:$0xff]
    %v250 = vld [vmem:[#allocation6 + $0x8] sm:$0xff]
    %v251 = vld [vmem:[#allocation6 + $0x10] sm:$0xff]
    %v252 = vld [vmem:[#allocation6 + $0x18] sm:$0xff]
    %v253 = vld [vmem:[#allocation6 + $0x20] sm:$0xff]
    %v254 = vld [vmem:[#allocation6 + $0x28] sm:$0xff]
    %v255 = vld [vmem:[#allocation6 + $0x30] sm:$0xff]
    %v256 = vld [vmem:[#allocation6 + $0x38] sm:$0xff]
    %v257 = vld [vmem:[#allocation6 + $0x40] sm:$0xff]
    %v258 = vld [vmem:[#allocation6 + $0x48] sm:$0xff]
    %v259 = vld [vmem:[#allocation6 + $0x50] sm:$0xff]
    %v260 = vld [vmem:[#allocation6 + $0x58] sm:$0xff]
    %v261 = vld [vmem:[#allocation6 + $0x60] sm:$0xff]
    %v262 = vld [vmem:[#allocation6 + $0x68] sm:$0xff]
    %v263 = vld [vmem:[#allocation6 + $0x70] sm:$0xff]
    %v264 = vld [vmem:[#allocation6 + $0x78] sm:$0xff]
    %v265 = vld [vmem:[#allocation6 + $0x80] sm:$0xff]
    %v266 = vld [vmem:[#allocation6 + $0x88] sm:$0xff]
    %v267 = vld [vmem:[#allocation6 + $0x90] sm:$0xff]
    %v268 = vld [vmem:[#allocation6 + $0x98] sm:$0xff]
    %v269 = vld [vmem:[#allocation6 + $0xa0] sm:$0xff]
    %v270 = vld [vmem:[#allocation6 + $0xa8] sm:$0xff]
    %v271 = vld [vmem:[#allocation6 + $0xb0] sm:$0xff]
    %v272 = vld [vmem:[#allocation6 + $0xb8] sm:$0xff]
    %v273 = vld [vmem:[#allocation6 + $0xc0] sm:$0xff]
    %v274 = vld [vmem:[#allocation6 + $0xc8] sm:$0xff]
    %v275 = vld [vmem:[#allocation6 + $0xd0] sm:$0xff]
    %v276 = vld [vmem:[#allocation6 + $0xd8] sm:$0xff]
    %v277 = vld [vmem:[#allocation6 + $0xe0] sm:$0xff]
    %v278 = vld [vmem:[#allocation6 + $0xe8] sm:$0xff]
    %v279 = vld [vmem:[#allocation6 + $0xf0] sm:$0xff]
    %v280 = vld [vmem:[#allocation6 + $0xf8] sm:$0xff]
    %v281 = vld [vmem:[#allocation6 + $0x100] sm:$0xff]
    %v282 = vld [vmem:[#allocation6 + $0x108] sm:$0xff]
    %v283 = vld [vmem:[#allocation6 + $0x110] sm:$0xff]
    %v284 = vld [vmem:[#allocation6 + $0x118] sm:$0xff]
    %v285 = vld [vmem:[#allocation6 + $0x120] sm:$0xff]
    %v286 = vld [vmem:[#allocation6 + $0x128] sm:$0xff]
    %v287 = vld [vmem:[#allocation6 + $0x130] sm:$0xff]
    %v288 = vld [vmem:[#allocation6 + $0x138] sm:$0xff]
    %v289 = vld [vmem:[#allocation6 + $0x140] sm:$0xff]
    %v290 = vld [vmem:[#allocation6 + $0x148] sm:$0xff]
    %v291 = vld [vmem:[#allocation6 + $0x150] sm:$0xff]
    %v292 = vld [vmem:[#allocation6 + $0x158] sm:$0xff]
    %v293 = vld [vmem:[#allocation6 + $0x160] sm:$0xff]
    %v294 = vld [vmem:[#allocation6 + $0x168] sm:$0xff]
    %v295 = vld [vmem:[#allocation6 + $0x170] sm:$0xff]
    %v296 = vld [vmem:[#allocation6 + $0x178] sm:$0xff]
    %v297 = vld [vmem:[#allocation6 + $0x180] sm:$0xff]
    %v298 = vld [vmem:[#allocation6 + $0x188] sm:$0xff]
    %v299 = vld [vmem:[#allocation6 + $0x190] sm:$0xff]
    %v300 = vld [vmem:[#allocation6 + $0x198] sm:$0xff]
    %v301 = vld [vmem:[#allocation6 + $0x1a0] sm:$0xff]
    %v302 = vld [vmem:[#allocation6 + $0x1a8] sm:$0xff]
    %v303 = vld [vmem:[#allocation6 + $0x1b0] sm:$0xff]
    %v304 = vld [vmem:[#allocation6 + $0x1b8] sm:$0xff]
    %v305 = vld [vmem:[#allocation6 + $0x1c0] sm:$0xff]
    %v306 = vld [vmem:[#allocation6 + $0x1c8] sm:$0xff]
    %v307 = vld [vmem:[#allocation6 + $0x1d0] sm:$0xff]
    %v308 = vld [vmem:[#allocation6 + $0x1d8] sm:$0xff]
    %v309 = vld [vmem:[#allocation6 + $0x1e0] sm:$0xff]
    %v310 = vld [vmem:[#allocation6 + $0x1e8] sm:$0xff]
    %v311 = vld [vmem:[#allocation6 + $0x1f0] sm:$0xff]
    %v312 = vld [vmem:[#allocation6 + $0x1f8] sm:$0xff]
    %v313 = vld [vmem:[#allocation6 + $0x200] sm:$0xff]
    %v314 = vld [vmem:[#allocation6 + $0x208] sm:$0xff]
    %v315 = vld [vmem:[#allocation6 + $0x210] sm:$0xff]
    %v316 = vld [vmem:[#allocation6 + $0x218] sm:$0xff]
    %v317 = vld [vmem:[#allocation6 + $0x220] sm:$0xff]
    %v318 = vld [vmem:[#allocation6 + $0x228] sm:$0xff]
    %v319 = vld [vmem:[#allocation6 + $0x230] sm:$0xff]
    %v320 = vld [vmem:[#allocation6 + $0x238] sm:$0xff]
    %v321 = vld [vmem:[#allocation6 + $0x240] sm:$0xff]
    %v322 = vld [vmem:[#allocation6 + $0x248] sm:$0xff]
    %v323 = vld [vmem:[#allocation6 + $0x250] sm:$0xff]
    %v324 = vld [vmem:[#allocation6 + $0x258] sm:$0xff]
    %v325 = vld [vmem:[#allocation6 + $0x260] sm:$0xff]
    %v326 = vld [vmem:[#allocation6 + $0x268] sm:$0xff]
    %v327 = vld [vmem:[#allocation6 + $0x270] sm:$0xff]
    %v328 = vld [vmem:[#allocation6 + $0x278] sm:$0xff]
    %v329 = vld [vmem:[#allocation6 + $0x280] sm:$0xff]
    %v330 = vld [vmem:[#allocation6 + $0x288] sm:$0xff]
    %v331 = vld [vmem:[#allocation6 + $0x290] sm:$0xff]
    %v332 = vld [vmem:[#allocation6 + $0x298] sm:$0xff]
    %v333 = vld [vmem:[#allocation6 + $0x2a0] sm:$0xff]
    %v334 = vld [vmem:[#allocation6 + $0x2a8] sm:$0xff]
    %v335 = vld [vmem:[#allocation6 + $0x2b0] sm:$0xff]
    %v336 = vld [vmem:[#allocation6 + $0x2b8] sm:$0xff]
    %v337 = vld [vmem:[#allocation6 + $0x2c0] sm:$0xff]
    %v338 = vld [vmem:[#allocation6 + $0x2c8] sm:$0xff]
    %v339 = vld [vmem:[#allocation6 + $0x2d0] sm:$0xff]
    %v340 = vld [vmem:[#allocation6 + $0x2d8] sm:$0xff]
    %v341 = vld [vmem:[#allocation6 + $0x2e0] sm:$0xff]
    %v342 = vld [vmem:[#allocation6 + $0x2e8] sm:$0xff]
    %v343 = vld [vmem:[#allocation6 + $0x2f0] sm:$0xff]
    %v344 = vld [vmem:[#allocation6 + $0x2f8] sm:$0xff]
    %v345 = vld [vmem:[#allocation6 + $0x300] sm:$0xff]
    %v346 = vld [vmem:[#allocation6 + $0x308] sm:$0xff]
    %v347 = vld [vmem:[#allocation6 + $0x310] sm:$0xff]
    %v348 = vld [vmem:[#allocation6 + $0x318] sm:$0xff]
    %v349 = vld [vmem:[#allocation6 + $0x320] sm:$0xff]
    %v350 = vld [vmem:[#allocation6 + $0x328] sm:$0xff]
    %v351 = vld [vmem:[#allocation6 + $0x330] sm:$0xff]
    %v352 = vld [vmem:[#allocation6 + $0x338] sm:$0xff]
    %v353 = vld [vmem:[#allocation6 + $0x340] sm:$0xff]
    %v354 = vld [vmem:[#allocation6 + $0x348] sm:$0xff]
    %v355 = vld [vmem:[#allocation6 + $0x350] sm:$0xff]
    %v356 = vld [vmem:[#allocation6 + $0x358] sm:$0xff]
    %v357 = vld [vmem:[#allocation6 + $0x360] sm:$0xff]
    %v358 = vld [vmem:[#allocation6 + $0x368] sm:$0xff]
    %v359 = vld [vmem:[#allocation6 + $0x370] sm:$0xff]
    %v360 = vld [vmem:[#allocation6 + $0x378] sm:$0xff]
    %v361 = vld [vmem:[#allocation6 + $0x380] sm:$0xff]
    %v362 = vld [vmem:[#allocation6 + $0x388] sm:$0xff]
    %v363 = vld [vmem:[#allocation6 + $0x390] sm:$0xff]
    %v364 = vld [vmem:[#allocation6 + $0x398] sm:$0xff]
    %v365 = vld [vmem:[#allocation6 + $0x3a0] sm:$0xff]
    %v366 = vld [vmem:[#allocation6 + $0x3a8] sm:$0xff]
    %v367 = vld [vmem:[#allocation6 + $0x3b0] sm:$0xff]
    %v368 = vld [vmem:[#allocation6 + $0x3b8] sm:$0xff]
    %v369 = vld [vmem:[#allocation6 + $0x3c0] sm:$0xff]
    %v370 = vld [vmem:[#allocation6 + $0x3c8] sm:$0xff]
    %v371 = vld [vmem:[#allocation6 + $0x3d0] sm:$0xff]
    %v372 = vld [vmem:[#allocation6 + $0x3d8] sm:$0xff]
    %v373 = vld [vmem:[#allocation6 + $0x3e0] sm:$0xff]
    %v374 = vld [vmem:[#allocation6 + $0x3e8] sm:$0xff]
    %v375 = vld [vmem:[#allocation6 + $0x3f0] sm:$0xff]
    %v376 = vld [vmem:[#allocation6 + $0x3f8] sm:$0xff]
    %v377 = vld [vmem:[#allocation6 + $0x400] sm:$0xff]
    %v378 = vld [vmem:[#allocation6 + $0x408] sm:$0xff]
    %v379 = vld [vmem:[#allocation6 + $0x410] sm:$0xff]
    %v380 = vld [vmem:[#allocation6 + $0x418] sm:$0xff]
    %v381 = vld [vmem:[#allocation6 + $0x420] sm:$0xff]
    %v382 = vld [vmem:[#allocation6 + $0x428] sm:$0xff]
    %v383 = vld [vmem:[#allocation6 + $0x430] sm:$0xff]
    %v384 = vld [vmem:[#allocation6 + $0x438] sm:$0xff]
    %v385 = vld [vmem:[#allocation6 + $0x440] sm:$0xff]
    %v386 = vld [vmem:[#allocation6 + $0x448] sm:$0xff]
    %v387 = vld [vmem:[#allocation6 + $0x450] sm:$0xff]
    %v388 = vld [vmem:[#allocation6 + $0x458] sm:$0xff]
    %v389 = vld [vmem:[#allocation6 + $0x460] sm:$0xff]
    %v390 = vld [vmem:[#allocation6 + $0x468] sm:$0xff]
    %v391 = vld [vmem:[#allocation6 + $0x470] sm:$0xff]
    %v392 = vld [vmem:[#allocation6 + $0x478] sm:$0xff]
    %v393 = vld [vmem:[#allocation6 + $0x480] sm:$0xff]
    %v394 = vld [vmem:[#allocation6 + $0x488] sm:$0xff]
    %v395 = vld [vmem:[#allocation6 + $0x490] sm:$0xff]
    %v396 = vld [vmem:[#allocation6 + $0x498] sm:$0xff]
    %v397 = vld [vmem:[#allocation6 + $0x4a0] sm:$0xff]
    %v398 = vld [vmem:[#allocation6 + $0x4a8] sm:$0xff]
    %v399 = vld [vmem:[#allocation6 + $0x4b0] sm:$0xff]
    %v400 = vld [vmem:[#allocation6 + $0x4b8] sm:$0xff]
    %v401 = vld [vmem:[#allocation6 + $0x4c0] sm:$0xff]
    %v402 = vld [vmem:[#allocation6 + $0x4c8] sm:$0xff]
    %v403 = vld [vmem:[#allocation6 + $0x4d0] sm:$0xff]
    %v404 = vld [vmem:[#allocation6 + $0x4d8] sm:$0xff]
    %v405 = vld [vmem:[#allocation6 + $0x4e0] sm:$0xff]
    %v406 = vld [vmem:[#allocation6 + $0x4e8] sm:$0xff]
    %v407 = vld [vmem:[#allocation6 + $0x4f0] sm:$0xff]
    %v408 = vld [vmem:[#allocation6 + $0x4f8] sm:$0xff]
    %v409 = vld [vmem:[#allocation6 + $0x500] sm:$0xff]
    %v410 = vld [vmem:[#allocation6 + $0x508] sm:$0xff]
    %v411 = vld [vmem:[#allocation6 + $0x510] sm:$0xff]
    %v412 = vld [vmem:[#allocation6 + $0x518] sm:$0xff]
    %v413 = vld [vmem:[#allocation6 + $0x520] sm:$0xff]
    %v414 = vld [vmem:[#allocation6 + $0x528] sm:$0xff]
    %v415 = vld [vmem:[#allocation6 + $0x530] sm:$0xff]
    %v416 = vld [vmem:[#allocation6 + $0x538] sm:$0xff]
    %v417 = vld [vmem:[#allocation6 + $0x540] sm:$0xff]
    %v418 = vld [vmem:[#allocation6 + $0x548] sm:$0xff]
    %v419 = vld [vmem:[#allocation6 + $0x550] sm:$0xff]
    %v420 = vld [vmem:[#allocation6 + $0x558] sm:$0xff]
    %v421 = vld [vmem:[#allocation6 + $0x560] sm:$0xff]
    %v422 = vld [vmem:[#allocation6 + $0x568] sm:$0xff]
    %v423 = vld [vmem:[#allocation6 + $0x570] sm:$0xff]
    %v424 = vld [vmem:[#allocation6 + $0x578] sm:$0xff]
    %v425 = vld [vmem:[#allocation6 + $0x580] sm:$0xff]
    %v426 = vld [vmem:[#allocation6 + $0x588] sm:$0xff]
    %v427 = vld [vmem:[#allocation6 + $0x590] sm:$0xff]
    %v428 = vld [vmem:[#allocation6 + $0x598] sm:$0xff]
    %v429 = vld [vmem:[#allocation6 + $0x5a0] sm:$0xff]
    %v430 = vld [vmem:[#allocation6 + $0x5a8] sm:$0xff]
    %v431 = vld [vmem:[#allocation6 + $0x5b0] sm:$0xff]
    %v432 = vld [vmem:[#allocation6 + $0x5b8] sm:$0xff]
    %v433 = vld [vmem:[#allocation6 + $0x5c0] sm:$0xff]
    %v434 = vld [vmem:[#allocation6 + $0x5c8] sm:$0xff]
    %v435 = vld [vmem:[#allocation6 + $0x5d0] sm:$0xff]
    %v436 = vld [vmem:[#allocation6 + $0x5d8] sm:$0xff]
    %v437 = vld [vmem:[#allocation6 + $0x5e0] sm:$0xff]
    %v438 = vld [vmem:[#allocation6 + $0x5e8] sm:$0xff]
    %v439 = vld [vmem:[#allocation6 + $0x5f0] sm:$0xff]
    %v440 = vld [vmem:[#allocation6 + $0x5f8] sm:$0xff]
    %v441 = vsub.f32 %v57, %v249
    %v442 = vsub.f32 %v58, %v250
    %v443 = vsub.f32 %v59, %v251
    %v444 = vsub.f32 %v60, %v252
    %v445 = vsub.f32 %v61, %v253
    %v446 = vsub.f32 %v62, %v254
    %v447 = vsub.f32 %v63, %v255
    %v448 = vsub.f32 %v64, %v256
    %v449 = vsub.f32 %v65, %v257
    %v450 = vsub.f32 %v66, %v258
    %v451 = vsub.f32 %v67, %v259
    %v452 = vsub.f32 %v68, %v260
    %v453 = vsub.f32 %v69, %v261
    %v454 = vsub.f32 %v70, %v262
    %v455 = vsub.f32 %v71, %v263
    %v456 = vsub.f32 %v72, %v264
    %v457 = vsub.f32 %v73, %v265
    %v458 = vsub.f32 %v74, %v266
    %v459 = vsub.f32 %v75, %v267
    %v460 = vsub.f32 %v76, %v268
    %v461 = vsub.f32 %v77, %v269
    %v462 = vsub.f32 %v78, %v270
    %v463 = vsub.f32 %v79, %v271
    %v464 = vsub.f32 %v80, %v272
    %v465 = vsub.f32 %v81, %v273
    %v466 = vsub.f32 %v82, %v274
    %v467 = vsub.f32 %v83, %v275
    %v468 = vsub.f32 %v84, %v276
    %v469 = vsub.f32 %v85, %v277
    %v470 = vsub.f32 %v86, %v278
    %v471 = vsub.f32 %v87, %v279
    %v472 = vsub.f32 %v88, %v280
    %v473 = vsub.f32 %v89, %v281
    %v474 = vsub.f32 %v90, %v282
    %v475 = vsub.f32 %v91, %v283
    %v476 = vsub.f32 %v92, %v284
    %v477 = vsub.f32 %v93, %v285
    %v478 = vsub.f32 %v94, %v286
    %v479 = vsub.f32 %v95, %v287
    %v480 = vsub.f32 %v96, %v288
    %v481 = vsub.f32 %v97, %v289
    %v482 = vsub.f32 %v98, %v290
    %v483 = vsub.f32 %v99, %v291
    %v484 = vsub.f32 %v100, %v292
    %v485 = vsub.f32 %v101, %v293
    %v486 = vsub.f32 %v102, %v294
    %v487 = vsub.f32 %v103, %v295
    %v488 = vsub.f32 %v104, %v296
    %v489 = vsub.f32 %v105, %v297
    %v490 = vsub.f32 %v106, %v298
    %v491 = vsub.f32 %v107, %v299
    %v492 = vsub.f32 %v108, %v300
    %v493 = vsub.f32 %v109, %v301
    %v494 = vsub.f32 %v110, %v302
    %v495 = vsub.f32 %v111, %v303
    %v496 = vsub.f32 %v112, %v304
    %v497 = vsub.f32 %v113, %v305
    %v498 = vsub.f32 %v114, %v306
    %v499 = vsub.f32 %v115, %v307
    %v500 = vsub.f32 %v116, %v308
    %v501 = vsub.f32 %v117, %v309
    %v502 = vsub.f32 %v118, %v310
    %v503 = vsub.f32 %v119, %v311
    %v504 = vsub.f32 %v120, %v312
    %v505 = vsub.f32 %v121, %v313
    %v506 = vsub.f32 %v122, %v314
    %v507 = vsub.f32 %v123, %v315
    %v508 = vsub.f32 %v124, %v316
    %v509 = vsub.f32 %v125, %v317
    %v510 = vsub.f32 %v126, %v318
    %v511 = vsub.f32 %v127, %v319
    %v512 = vsub.f32 %v128, %v320
    %v513 = vsub.f32 %v129, %v321
    %v514 = vsub.f32 %v130, %v322
    %v515 = vsub.f32 %v131, %v323
    %v516 = vsub.f32 %v132, %v324
    %v517 = vsub.f32 %v133, %v325
    %v518 = vsub.f32 %v134, %v326
    %v519 = vsub.f32 %v135, %v327
    %v520 = vsub.f32 %v136, %v328
    %v521 = vsub.f32 %v137, %v329
    %v522 = vsub.f32 %v138, %v330
    %v523 = vsub.f32 %v139, %v331
    %v524 = vsub.f32 %v140, %v332
    %v525 = vsub.f32 %v141, %v333
    %v526 = vsub.f32 %v142, %v334
    %v527 = vsub.f32 %v143, %v335
    %v528 = vsub.f32 %v144, %v336
    %v529 = vsub.f32 %v145, %v337
    %v530 = vsub.f32 %v146, %v338
    %v531 = vsub.f32 %v147, %v339
    %v532 = vsub.f32 %v148, %v340
    %v533 = vsub.f32 %v149, %v341
    %v534 = vsub.f32 %v150, %v342
    %v535 = vsub.f32 %v151, %v343
    %v536 = vsub.f32 %v152, %v344
    %v537 = vsub.f32 %v153, %v345
    %v538 = vsub.f32 %v154, %v346
    %v539 = vsub.f32 %v155, %v347
    %v540 = vsub.f32 %v156, %v348
    %v541 = vsub.f32 %v157, %v349
    %v542 = vsub.f32 %v158, %v350
    %v543 = vsub.f32 %v159, %v351
    %v544 = vsub.f32 %v160, %v352
    %v545 = vsub.f32 %v161, %v353
    %v546 = vsub.f32 %v162, %v354
    %v547 = vsub.f32 %v163, %v355
    %v548 = vsub.f32 %v164, %v356
    %v549 = vsub.f32 %v165, %v357
    %v550 = vsub.f32 %v166, %v358
    %v551 = vsub.f32 %v167, %v359
    %v552 = vsub.f32 %v168, %v360
    %v553 = vsub.f32 %v169, %v361
    %v554 = vsub.f32 %v170, %v362
    %v555 = vsub.f32 %v171, %v363
    %v556 = vsub.f32 %v172, %v364
    %v557 = vsub.f32 %v173, %v365
    %v558 = vsub.f32 %v174, %v366
    %v559 = vsub.f32 %v175, %v367
    %v560 = vsub.f32 %v176, %v368
    %v561 = vsub.f32 %v177, %v369
    %v562 = vsub.f32 %v178, %v370
    %v563 = vsub.f32 %v179, %v371
    %v564 = vsub.f32 %v180, %v372
    %v565 = vsub.f32 %v181, %v373
    %v566 = vsub.f32 %v182, %v374
    %v567 = vsub.f32 %v183, %v375
    %v568 = vsub.f32 %v184, %v376
    %v569 = vsub.f32 %v185, %v377
    %v570 = vsub.f32 %v186, %v378
    %v571 = vsub.f32 %v187, %v379
    %v572 = vsub.f32 %v188, %v380
    %v573 = vsub.f32 %v189, %v381
    %v574 = vsub.f32 %v190, %v382
    %v575 = vsub.f32 %v191, %v383
    %v576 = vsub.f32 %v192, %v384
    %v577 = vsub.f32 %v193, %v385
    %v578 = vsub.f32 %v194, %v386
    %v579 = vsub.f32 %v195, %v387
    %v580 = vsub.f32 %v196, %v388
    %v581 = vsub.f32 %v197, %v389
    %v582 = vsub.f32 %v198, %v390
    %v583 = vsub.f32 %v199, %v391
    %v584 = vsub.f32 %v200, %v392
    %v585 = vsub.f32 %v201, %v393
    %v586 = vsub.f32 %v202, %v394
    %v587 = vsub.f32 %v203, %v395
    %v588 = vsub.f32 %v204, %v396
    %v589 = vsub.f32 %v205, %v397
    %v590 = vsub.f32 %v206, %v398
    %v591 = vsub.f32 %v207, %v399
    %v592 = vsub.f32 %v208, %v400
    %v593 = vsub.f32 %v209, %v401
    %v594 = vsub.f32 %v210, %v402
    %v595 = vsub.f32 %v211, %v403
    %v596 = vsub.f32 %v212, %v404
    %v597 = vsub.f32 %v213, %v405
    %v598 = vsub.f32 %v214, %v406
    %v599 = vsub.f32 %v215, %v407
    %v600 = vsub.f32 %v216, %v408
    %v601 = vsub.f32 %v217, %v409
    %v602 = vsub.f32 %v218, %v410
    %v603 = vsub.f32 %v219, %v411
    %v604 = vsub.f32 %v220, %v412
    %v605 = vsub.f32 %v221, %v413
    %v606 = vsub.f32 %v222, %v414
    %v607 = vsub.f32 %v223, %v415
    %v608 = vsub.f32 %v224, %v416
    %v609 = vsub.f32 %v225, %v417
    %v610 = vsub.f32 %v226, %v418
    %v611 = vsub.f32 %v227, %v419
    %v612 = vsub.f32 %v228, %v420
    %v613 = vsub.f32 %v229, %v421
    %v614 = vsub.f32 %v230, %v422
    %v615 = vsub.f32 %v231, %v423
    %v616 = vsub.f32 %v232, %v424
    %v617 = vsub.f32 %v233, %v425
    %v618 = vsub.f32 %v234, %v426
    %v619 = vsub.f32 %v235, %v427
    %v620 = vsub.f32 %v236, %v428
    %v621 = vsub.f32 %v237, %v429
    %v622 = vsub.f32 %v238, %v430
    %v623 = vsub.f32 %v239, %v431
    %v624 = vsub.f32 %v240, %v432
    %v625 = vsub.f32 %v241, %v433
    %v626 = vsub.f32 %v242, %v434
    %v627 = vsub.f32 %v243, %v435
    %v628 = vsub.f32 %v244, %v436
    %v629 = vsub.f32 %v245, %v437
    %v630 = vsub.f32 %v246, %v438
    %v631 = vsub.f32 %v247, %v439
    %v632 = vsub.f32 %v248, %v440
    %v633 = vmul.f32 %v441, %v441
    %v634 = vmul.f32 %v442, %v442
    %v635 = vmul.f32 %v443, %v443
    %v636 = vmul.f32 %v444, %v444
    %v637 = vmul.f32 %v445, %v445
    %v638 = vmul.f32 %v446, %v446
    %v639 = vmul.f32 %v447, %v447
    %v640 = vmul.f32 %v448, %v448
    %v641 = vmul.f32 %v449, %v449
    %v642 = vmul.f32 %v450, %v450
    %v643 = vmul.f32 %v451, %v451
    %v644 = vmul.f32 %v452, %v452
    %v645 = vmul.f32 %v453, %v453
    %v646 = vmul.f32 %v454, %v454
    %v647 = vmul.f32 %v455, %v455
    %v648 = vmul.f32 %v456, %v456
    %v649 = vmul.f32 %v457, %v457
    %v650 = vmul.f32 %v458, %v458
    %v651 = vmul.f32 %v459, %v459
    %v652 = vmul.f32 %v460, %v460
    %v653 = vmul.f32 %v461, %v461
    %v654 = vmul.f32 %v462, %v462
    %v655 = vmul.f32 %v463, %v463
    %v656 = vmul.f32 %v464, %v464
    %v657 = vmul.f32 %v465, %v465
    %v658 = vmul.f32 %v466, %v466
    %v659 = vmul.f32 %v467, %v467
    %v660 = vmul.f32 %v468, %v468
    %v661 = vmul.f32 %v469, %v469
    %v662 = vmul.f32 %v470, %v470
    %v663 = vmul.f32 %v471, %v471
    %v664 = vmul.f32 %v472, %v472
    %v665 = vmul.f32 %v473, %v473
    %v666 = vmul.f32 %v474, %v474
    %v667 = vmul.f32 %v475, %v475
    %v668 = vmul.f32 %v476, %v476
    %v669 = vmul.f32 %v477, %v477
    %v670 = vmul.f32 %v478, %v478
    %v671 = vmul.f32 %v479, %v479
    %v672 = vmul.f32 %v480, %v480
    %v673 = vmul.f32 %v481, %v481
    %v674 = vmul.f32 %v482, %v482
    %v675 = vmul.f32 %v483, %v483
    %v676 = vmul.f32 %v484, %v484
    %v677 = vmul.f32 %v485, %v485
    %v678 = vmul.f32 %v486, %v486
    %v679 = vmul.f32 %v487, %v487
    %v680 = vmul.f32 %v488, %v488
    %v681 = vmul.f32 %v489, %v489
    %v682 = vmul.f32 %v490, %v490
    %v683 = vmul.f32 %v491, %v491
    %v684 = vmul.f32 %v492, %v492
    %v685 = vmul.f32 %v493, %v493
    %v686 = vmul.f32 %v494, %v494
    %v687 = vmul.f32 %v495, %v495
    %v688 = vmul.f32 %v496, %v496
    %v689 = vmul.f32 %v497, %v497
    %v690 = vmul.f32 %v498, %v498
    %v691 = vmul.f32 %v499, %v499
    %v692 = vmul.f32 %v500, %v500
    %v693 = vmul.f32 %v501, %v501
    %v694 = vmul.f32 %v502, %v502
    %v695 = vmul.f32 %v503, %v503
    %v696 = vmul.f32 %v504, %v504
    %v697 = vmul.f32 %v505, %v505
    %v698 = vmul.f32 %v506, %v506
    %v699 = vmul.f32 %v507, %v507
    %v700 = vmul.f32 %v508, %v508
    %v701 = vmul.f32 %v509, %v509
    %v702 = vmul.f32 %v510, %v510
    %v703 = vmul.f32 %v511, %v511
    %v704 = vmul.f32 %v512, %v512
    %v705 = vmul.f32 %v513, %v513
    %v706 = vmul.f32 %v514, %v514
    %v707 = vmul.f32 %v515, %v515
    %v708 = vmul.f32 %v516, %v516
    %v709 = vmul.f32 %v517, %v517
    %v710 = vmul.f32 %v518, %v518
    %v711 = vmul.f32 %v519, %v519
    %v712 = vmul.f32 %v520, %v520
    %v713 = vmul.f32 %v521, %v521
    %v714 = vmul.f32 %v522, %v522
    %v715 = vmul.f32 %v523, %v523
    %v716 = vmul.f32 %v524, %v524
    %v717 = vmul.f32 %v525, %v525
    %v718 = vmul.f32 %v526, %v526
    %v719 = vmul.f32 %v527, %v527
    %v720 = vmul.f32 %v528, %v528
    %v721 = vmul.f32 %v529, %v529
    %v722 = vmul.f32 %v530, %v530
    %v723 = vmul.f32 %v531, %v531
    %v724 = vmul.f32 %v532, %v532
    %v725 = vmul.f32 %v533, %v533
    %v726 = vmul.f32 %v534, %v534
    %v727 = vmul.f32 %v535, %v535
    %v728 = vmul.f32 %v536, %v536
    %v729 = vmul.f32 %v537, %v537
    %v730 = vmul.f32 %v538, %v538
    %v731 = vmul.f32 %v539, %v539
    %v732 = vmul.f32 %v540, %v540
    %v733 = vmul.f32 %v541, %v541
    %v734 = vmul.f32 %v542, %v542
    %v735 = vmul.f32 %v543, %v543
    %v736 = vmul.f32 %v544, %v544
    %v737 = vmul.f32 %v545, %v545
    %v738 = vmul.f32 %v546, %v546
    %v739 = vmul.f32 %v547, %v547
    %v740 = vmul.f32 %v548, %v548
    %v741 = vmul.f32 %v549, %v549
    %v742 = vmul.f32 %v550, %v550
    %v743 = vmul.f32 %v551, %v551
    %v744 = vmul.f32 %v552, %v552
    %v745 = vmul.f32 %v553, %v553
    %v746 = vmul.f32 %v554, %v554
    %v747 = vmul.f32 %v555, %v555
    %v748 = vmul.f32 %v556, %v556
    %v749 = vmul.f32 %v557, %v557
    %v750 = vmul.f32 %v558, %v558
    %v751 = vmul.f32 %v559, %v559
    %v752 = vmul.f32 %v560, %v560
    %v753 = vmul.f32 %v561, %v561
    %v754 = vmul.f32 %v562, %v562
    %v755 = vmul.f32 %v563, %v563
    %v756 = vmul.f32 %v564, %v564
    %v757 = vmul.f32 %v565, %v565
    %v758 = vmul.f32 %v566, %v566
    %v759 = vmul.f32 %v567, %v567
    %v760 = vmul.f32 %v568, %v568
    %v761 = vmul.f32 %v569, %v569
    %v762 = vmul.f32 %v570, %v570
    %v763 = vmul.f32 %v571, %v571
    %v764 = vmul.f32 %v572, %v572
    %v765 = vmul.f32 %v573, %v573
    %v766 = vmul.f32 %v574, %v574
    %v767 = vmul.f32 %v575, %v575
    %v768 = vmul.f32 %v576, %v576
    %v769 = vmul.f32 %v577, %v577
    %v770 = vmul.f32 %v578, %v578
    %v771 = vmul.f32 %v579, %v579
    %v772 = vmul.f32 %v580, %v580
    %v773 = vmul.f32 %v581, %v581
    %v774 = vmul.f32 %v582, %v582
    %v775 = vmul.f32 %v583, %v583
    %v776 = vmul.f32 %v584, %v584
    %v777 = vmul.f32 %v585, %v585
    %v778 = vmul.f32 %v586, %v586
    %v779 = vmul.f32 %v587, %v587
    %v780 = vmul.f32 %v588, %v588
    %v781 = vmul.f32 %v589, %v589
    %v782 = vmul.f32 %v590, %v590
    %v783 = vmul.f32 %v591, %v591
    %v784 = vmul.f32 %v592, %v592
    %v785 = vmul.f32 %v593, %v593
    %v786 = vmul.f32 %v594, %v594
    %v787 = vmul.f32 %v595, %v595
    %v788 = vmul.f32 %v596, %v596
    %v789 = vmul.f32 %v597, %v597
    %v790 = vmul.f32 %v598, %v598
    %v791 = vmul.f32 %v599, %v599
    %v792 = vmul.f32 %v600, %v600
    %v793 = vmul.f32 %v601, %v601
    %v794 = vmul.f32 %v602, %v602
    %v795 = vmul.f32 %v603, %v603
    %v796 = vmul.f32 %v604, %v604
    %v797 = vmul.f32 %v605, %v605
    %v798 = vmul.f32 %v606, %v606
    %v799 = vmul.f32 %v607, %v607
    %v800 = vmul.f32 %v608, %v608
    %v801 = vmul.f32 %v609, %v609
    %v802 = vmul.f32 %v610, %v610
    %v803 = vmul.f32 %v611, %v611
    %v804 = vmul.f32 %v612, %v612
    %v805 = vmul.f32 %v613, %v613
    %v806 = vmul.f32 %v614, %v614
    %v807 = vmul.f32 %v615, %v615
    %v808 = vmul.f32 %v616, %v616
    %v809 = vmul.f32 %v617, %v617
    %v810 = vmul.f32 %v618, %v618
    %v811 = vmul.f32 %v619, %v619
    %v812 = vmul.f32 %v620, %v620
    %v813 = vmul.f32 %v621, %v621
    %v814 = vmul.f32 %v622, %v622
    %v815 = vmul.f32 %v623, %v623
    %v816 = vmul.f32 %v624, %v624
    %v817 = vmul.f32 %v625, %v625
    %v818 = vmul.f32 %v626, %v626
    %v819 = vmul.f32 %v627, %v627
    %v820 = vmul.f32 %v628, %v628
    %v821 = vmul.f32 %v629, %v629
    %v822 = vmul.f32 %v630, %v630
    %v823 = vmul.f32 %v631, %v631
    %v824 = vmul.f32 %v632, %v632
    %v825 = vld [vmem:[#allocation2] sm:$0xff]
    %v826 = vadd.f32 %v633, %v634
    %v827 = vadd.f32 %v826, %v635
    %v828 = vadd.f32 %v827, %v636
    %v829 = vadd.f32 %v828, %v637
    %v830 = vadd.f32 %v829, %v638
    %v831 = vadd.f32 %v830, %v639
    %v832 = vadd.f32 %v831, %v640
    %v833 = vadd.f32 %v832, %v641
    %v834 = vadd.f32 %v833, %v642
    %v835 = vadd.f32 %v834, %v643
    %v836 = vadd.f32 %v835, %v644
    %v837 = vadd.f32 %v836, %v645
    %v838 = vadd.f32 %v837, %v646
    %v839 = vadd.f32 %v838, %v647
    %v840 = vadd.f32 %v839, %v648
    %v841 = vadd.f32 %v840, %v649
    %v842 = vadd.f32 %v841, %v650
    %v843 = vadd.f32 %v842, %v651
    %v844 = vadd.f32 %v843, %v652
    %v845 = vadd.f32 %v844, %v653
    %v846 = vadd.f32 %v845, %v654
    %v847 = vadd.f32 %v846, %v655
    %v848 = vadd.f32 %v847, %v656
    %v849 = vadd.f32 %v848, %v657
    %v850 = vadd.f32 %v849, %v658
    %v851 = vadd.f32 %v850, %v659
    %v852 = vadd.f32 %v851, %v660
    %v853 = vadd.f32 %v852, %v661
    %v854 = vadd.f32 %v853, %v662
    %v855 = vadd.f32 %v854, %v663
    %v856 = vadd.f32 %v855, %v664
    %v857 = vadd.f32 %v856, %v665
    %v858 = vadd.f32 %v857, %v666
    %v859 = vadd.f32 %v858, %v667
    %v860 = vadd.f32 %v859, %v668
    %v861 = vadd.f32 %v860, %v669
    %v862 = vadd.f32 %v861, %v670
    %v863 = vadd.f32 %v862, %v671
    %v864 = vadd.f32 %v863, %v672
    %v865 = vadd.f32 %v864, %v673
    %v866 = vadd.f32 %v865, %v674
    %v867 = vadd.f32 %v866, %v675
    %v868 = vadd.f32 %v867, %v676
    %v869 = vadd.f32 %v868, %v677
    %v870 = vadd.f32 %v869, %v678
    %v871 = vadd.f32 %v870, %v679
    %v872 = vadd.f32 %v871, %v680
    %v873 = vadd.f32 %v872, %v681
    %v874 = vadd.f32 %v873, %v682
    %v875 = vadd.f32 %v874, %v683
    %v876 = vadd.f32 %v875, %v684
    %v877 = vadd.f32 %v876, %v685
    %v878 = vadd.f32 %v877, %v686
    %v879 = vadd.f32 %v878, %v687
    %v880 = vadd.f32 %v879, %v688
    %v881 = vadd.f32 %v880, %v689
    %v882 = vadd.f32 %v881, %v690
    %v883 = vadd.f32 %v882, %v691
    %v884 = vadd.f32 %v883, %v692
    %v885 = vadd.f32 %v884, %v693
    %v886 = vadd.f32 %v885, %v694
    %v887 = vadd.f32 %v886, %v695
    %v888 = vadd.f32 %v887, %v696
    %v889 = vadd.f32 %v888, %v697
    %v890 = vadd.f32 %v889, %v698
    %v891 = vadd.f32 %v890, %v699
    %v892 = vadd.f32 %v891, %v700
    %v893 = vadd.f32 %v892, %v701
    %v894 = vadd.f32 %v893, %v702
    %v895 = vadd.f32 %v894, %v703
    %v896 = vadd.f32 %v895, %v704
    %v897 = vadd.f32 %v896, %v705
    %v898 = vadd.f32 %v897, %v706
    %v899 = vadd.f32 %v898, %v707
    %v900 = vadd.f32 %v899, %v708
    %v901 = vadd.f32 %v900, %v709
    %v902 = vadd.f32 %v901, %v710
    %v903 = vadd.f32 %v902, %v711
    %v904 = vadd.f32 %v903, %v712
    %v905 = vadd.f32 %v904, %v713
    %v906 = vadd.f32 %v905, %v714
    %v907 = vadd.f32 %v906, %v715
    %v908 = vadd.f32 %v907, %v716
    %v909 = vadd.f32 %v908, %v717
    %v910 = vadd.f32 %v909, %v718
    %v911 = vadd.f32 %v910, %v719
    %v912 = vadd.f32 %v911, %v720
    %v913 = vadd.f32 %v912, %v721
    %v914 = vadd.f32 %v913, %v722
    %v915 = vadd.f32 %v914, %v723
    %v916 = vadd.f32 %v915, %v724
    %v917 = vadd.f32 %v916, %v725
    %v918 = vadd.f32 %v917, %v726
    %v919 = vadd.f32 %v918, %v727
    %v920 = vadd.f32 %v919, %v728
    %v921 = vadd.f32 %v920, %v729
    %v922 = vadd.f32 %v921, %v730
    %v923 = vadd.f32 %v922, %v731
    %v924 = vadd.f32 %v923, %v732
    %v925 = vadd.f32 %v924, %v733
    %v926 = vadd.f32 %v925, %v734
    %v927 = vadd.f32 %v926, %v735
    %v928 = vadd.f32 %v927, %v736
    %v929 = vadd.f32 %v928, %v737
    %v930 = vadd.f32 %v929, %v738
    %v931 = vadd.f32 %v930, %v739
    %v932 = vadd.f32 %v931, %v740
    %v933 = vadd.f32 %v932, %v741
    %v934 = vadd.f32 %v933, %v742
    %v935 = vadd.f32 %v934, %v743
    %v936 = vadd.f32 %v935, %v744
    %v937 = vadd.f32 %v936, %v745
    %v938 = vadd.f32 %v937, %v746
    %v939 = vadd.f32 %v938, %v747
    %v940 = vadd.f32 %v939, %v748
    %v941 = vadd.f32 %v940, %v749
    %v942 = vadd.f32 %v941, %v750
    %v943 = vadd.f32 %v942, %v751
    %v944 = vadd.f32 %v943, %v752
    %v945 = vadd.f32 %v944, %v753
    %v946 = vadd.f32 %v945, %v754
    %v947 = vadd.f32 %v946, %v755
    %v948 = vadd.f32 %v947, %v756
    %v949 = vadd.f32 %v948, %v757
    %v950 = vadd.f32 %v949, %v758
    %v951 = vadd.f32 %v950, %v759
    %v952 = vadd.f32 %v951, %v760
    %v953 = vadd.f32 %v952, %v761
    %v954 = vadd.f32 %v953, %v762
    %v955 = vadd.f32 %v954, %v763
    %v956 = vadd.f32 %v955, %v764
    %v957 = vadd.f32 %v956, %v765
    %v958 = vadd.f32 %v957, %v766
    %v959 = vadd.f32 %v958, %v767
    %v960 = vadd.f32 %v959, %v768
    %v961 = vadd.f32 %v960, %v769
    %v962 = vadd.f32 %v961, %v770
    %v963 = vadd.f32 %v962, %v771
    %v964 = vadd.f32 %v963, %v772
    %v965 = vadd.f32 %v964, %v773
    %v966 = vadd.f32 %v965, %v774
    %v967 = vadd.f32 %v966, %v775
    %v968 = vadd.f32 %v967, %v776
    %v969 = vadd.f32 %v968, %v777
    %v970 = vadd.f32 %v969, %v778
    %v971 = vadd.f32 %v970, %v779
    %v972 = vadd.f32 %v971, %v780
    %v973 = vadd.f32 %v972, %v781
    %v974 = vadd.f32 %v973, %v782
    %v975 = vadd.f32 %v974, %v783
    %v976 = vadd.f32 %v975, %v784
    %v977 = vadd.f32 %v976, %v785
    %v978 = vadd.f32 %v977, %v786
    %v979 = vadd.f32 %v978, %v787
    %v980 = vadd.f32 %v979, %v788
    %v981 = vadd.f32 %v980, %v789
    %v982 = vadd.f32 %v981, %v790
    %v983 = vadd.f32 %v982, %v791
    %v984 = vadd.f32 %v983, %v792
    %v985 = vadd.f32 %v984, %v793
    %v986 = vadd.f32 %v985, %v794
    %v987 = vadd.f32 %v986, %v795
    %v988 = vadd.f32 %v987, %v796
    %v989 = vadd.f32 %v988, %v797
    %v990 = vadd.f32 %v989, %v798
    %v991 = vadd.f32 %v990, %v799
    %v992 = vadd.f32 %v991, %v800
    %v993 = vadd.f32 %v992, %v801
    %v994 = vadd.f32 %v993, %v802
    %v995 = vadd.f32 %v994, %v803
    %v996 = vadd.f32 %v995, %v804
    %v997 = vadd.f32 %v996, %v805
    %v998 = vadd.f32 %v997, %v806
    %v999 = vadd.f32 %v998, %v807
    %v1000 = vadd.f32 %v999, %v808
    %v1001 = vadd.f32 %v1000, %v809
    %v1002 = vadd.f32 %v1001, %v810
    %v1003 = vadd.f32 %v1002, %v811
    %v1004 = vadd.f32 %v1003, %v812
    %v1005 = vadd.f32 %v1004, %v813
    %v1006 = vadd.f32 %v1005, %v814
    %v1007 = vadd.f32 %v1006, %v815
    %v1008 = vadd.f32 %v1007, %v816
    %v1009 = vadd.f32 %v1008, %v817
    %v1010 = vadd.f32 %v1009, %v818
    %v1011 = vadd.f32 %v1010, %v819
    %v1012 = vadd.f32 %v1011, %v820
    %v1013 = vadd.f32 %v1012, %v821
    %v1014 = vadd.f32 %v1013, %v822
    %v1015 = vadd.f32 %v1014, %v823
    %v1016 = vadd.f32 %v1015, %v824
    %v1017 = vadd.f32 %v825, %v1016
    %1018 = vst [vmem:[#allocation2] sm:$0xff] %v1017
    // Predicated region
    $region22: #{tpu_custom_call.1} parent=1 // pred_check
      %p1019 = pneg %p52
    $region23: #{tpu_custom_call.1} parent=1 // pred_check_branch
      %1021 = sbr.rel (%p1019) target = $region25
    $region24: #{tpu_custom_call.1} parent=1 // pred_region
      %v1022 = vld [vmem:[#allocation2] sm:$0xff]
      %1023 = vadd.xlane.f32.xlu0 %v1022
      %v1024 = vpop.xlane.xlu0 %1023
      %v1025 = vrot.slane %v1024, 4
      %v1026 = vadd.f32 %v1024, %v1025
      %v1027 = vrot.slane %v1026, 2
      %v1028 = vadd.f32 %v1026, %v1027
      %v1029 = vrot.slane %v1028, 1
      %v1030 = vadd.f32 %v1028, %v1029
      %s1031 = vtos %v1030
      %s1032 = scalar_lea.smem [#allocation8], 0
      %1033 = sst [smem:[%s1032]] %s1031
    $region25: #{tpu_custom_call.1} parent=1 // pred_fallthru
      _
    // Predicated region
    $region26: #{tpu_custom_call.1} parent=1 // pred_check
      _
    $region27: #{tpu_custom_call.1} parent=1 // pred_check_branch
      %1035 = sbr.rel (0) target = $region29
    $region28: #{tpu_custom_call.1} parent=1 // pred_region
      %s1037 = ssub.s32 16, 16
      %1038 = vsyncadd [#allocation5], %s1037
      %1041 = dma.smem_to_hbm [#allocation8], 16, %s2, [#allocation5]
    $region29: #{tpu_custom_call.1} parent=1 // pred_fallthru
      _
    // Predicated region
    $region30: #{tpu_custom_call.1} parent=1 // pred_check
      _
    $region31: #{tpu_custom_call.1} parent=1 // pred_check_branch
      %1043 = sbr.rel (0) target = $region33
    $region32: #{tpu_custom_call.1} parent=1 // pred_region
      %1044 = dma.done [#allocation5], 16
    $region33: #{tpu_custom_call.1} parent=1 // pred_fallthru
      _
    %1045 = sfence
    %1046 = vsyncpa [#allocation4], 1
    %1047 = vsyncpa [#allocation7], 1
    %1048 = vsyncpa [#allocation5], 1

</llo_original>
